<compile_context>
chip_gen: v5e
topology: v5e:2x2
jax: 0.10.0
libtpu: 0.0.40
codegen_flags: <defaults>
</compile_context>

<pallas_src>
import jax
import jax.numpy as jnp
from jax import lax
from jax.experimental import pallas as pl
from jax.experimental.pallas import tpu as pltpu

BN_EPS = 1e-5
LRELU_SLOPE = 0.1


def conv_bn_leaky_relu(x_nchw, weight, bias, gamma, beta, *,
                       padding=1, stride=1, dilation=1,
                       mxu_dtype=jnp.bfloat16):
    """Conv2d -> BatchNorm2d (training batch statistics) -> LeakyReLU(0.1), NCHW."""
    del bias  # cancelled exactly by the BN mean subtraction (see header comment)

    N, C, H, W = x_nchw.shape
    OC, IC, KH, KW = weight.shape
    assert IC == C
    # TODO(synk): stride > 1 would need a strided lane-slice RHS (untested lowering on
    # HW) - gated off; the module/test use stride=1.
    assert stride == 1, "only stride=1 is supported by this Pallas path"

    HP = H + 2 * padding
    WP = W + 2 * padding
    OH = (HP - dilation * (KH - 1) - 1) // stride + 1
    OW = (WP - dilation * (KW - 1) - 1) // stride + 1
    OHWP = OH * WP            # columns produced by the flattened matmul (incl. WP-OW scratch)
    OHOW = OH * OW            # lane-dense valid columns kept in the workspace / output
    K = KH * KW * C           # fused contraction size of the single MXU matmul

    # ---- glue: flatten the padded image so every filter tap is a plain lane slice ----
    off_max = dilation * ((KH - 1) * WP + (KW - 1))
    flat_needed = off_max + (OHWP - 1) + 1
    tail = max(0, flat_needed - HP * WP)

    xp = jnp.pad(x_nchw.astype(jnp.float32),
                 ((0, 0), (0, 0), (padding, padding), (padding, padding)))
    xflat = xp.reshape(N, C, HP * WP)                       # contiguous -> free reshape
    if tail:
        xflat = jnp.pad(xflat, ((0, 0), (0, 0), (0, tail)))
    FLAT = HP * WP + tail
    xflat = xflat.astype(mxu_dtype)                         # bf16 MXU operand, half the DMA

    # fused weight: row (kh*KW + kw)*C + c  <->  weight[o, c, kh, kw]
    wf = jnp.transpose(weight.astype(jnp.float32), (0, 2, 3, 1)).reshape(OC, K)
    wf = wf.astype(mxu_dtype)

    g2 = gamma.astype(jnp.float32).reshape(OC, 1)
    b2 = beta.astype(jnp.float32).reshape(OC, 1)

    # Whole batch per grid step at these tiny shapes (per-step VMEM is a few KiB).
    # TODO(synk): for large N/C/H, pick B_BLK from a VMEM budget (v7x has 64 MiB) and
    # spill the workspace to HBM (the old 2-pass structure) once it no longer fits.
    B_BLK = N
    assert N % B_BLK == 0
    NB = N // B_BLK

    tap_offsets = [dilation * (kh * WP + kw) for kh in range(KH) for kw in range(KW)]
    inv_m = 1.0 / float(N * OHOW)

    def kernel(x_ref, w_ref, g_ref, bt_ref, o_ref, ws_ref, sum_acc, ssq_acc):
        p = pl.program_id(0)      # phase: 0 = conv + stats, 1 = BN affine + LeakyReLU
        b = pl.program_id(1)      # batch block

        @pl.when(p == 0)
        def _conv_and_stats():
            @pl.when(b == 0)
            def _():
                sum_acc[...] = jnp.zeros_like(sum_acc)
                ssq_acc[...] = jnp.zeros_like(ssq_acc)

            csum = jnp.zeros((OC, 1), jnp.float32)
            cssq = jnp.zeros((OC, 1), jnp.float32)
            for n in range(B_BLK):                           # static unroll (B_BLK = 2)
                x = x_ref[n]                                 # [C, FLAT] bf16, read once
                # im2col built in VMEM registers only: 9 shifted lane slices stacked on
                # the sublane axis -> single K=36 MXU matmul instead of 9 K=4 matmuls.
                xcat = jnp.concatenate(
                    [x[:, off:off + OHWP] for off in tap_offsets], axis=0)   # [K, OHWP]
                acc = jnp.dot(w_ref[...], xcat,
                              preferred_element_type=jnp.float32)            # [OC, OHWP] f32
                # drop the WP-OW padded-scratch columns -> lane-dense [OC, OH*OW]
                accc = jnp.concatenate(
                    [acc[:, r * WP: r * WP + OW] for r in range(OH)], axis=1)
                ws_ref[b * B_BLK + n] = accc
                csum = csum + jnp.sum(accc, axis=1, keepdims=True)
                cssq = cssq + jnp.sum(accc * accc, axis=1, keepdims=True)
            sum_acc[...] += csum                             # sequential ('arbitrary') grid
            ssq_acc[...] += cssq

        @pl.when(p == 1)
        def _bn_lrelu():
            # Fold batch stats + gamma/beta into one per-channel scale/shift (f32).
            # NOTE: E[x^2]-E[x]^2 variance; fine at these magnitudes (near-zero mean).
            mean = sum_acc[...] * inv_m                                   # [OC, 1]
            var = jnp.maximum(ssq_acc[...] * inv_m - mean * mean, 0.0)    # biased (PyTorch)
            scale = g_ref[...] * lax.rsqrt(var + BN_EPS)
            shift = bt_ref[...] - mean * scale
            for n in range(B_BLK):
                z = ws_ref[b * B_BLK + n] * scale + shift                 # one fma / element
                o_ref[n] = jnp.where(z > 0, z, LRELU_SLOPE * z)           # dense 256-lane store

        # phase 0 never writes o_ref; its block index stays at 0 until phase 1, so the
        # only HBM write-backs carry the final phase-1 data.

    out_flat = pl.pallas_call(
        kernel,
        out_shape=jax.ShapeDtypeStruct((N, OC, OHOW), jnp.float32),
        grid_spec=pltpu.PrefetchScalarGridSpec(
            num_scalar_prefetch=0,
            grid=(2, NB),
            in_specs=[
                # phase 0 walks the batch blocks; phase 1 pins the index at the last
                # block so the (already resident) x slab is never re-fetched.
                pl.BlockSpec((B_BLK, C, FLAT),
                             lambda p, b: ((1 - p) * b + p * (NB - 1), 0, 0)),
                pl.BlockSpec((OC, K), lambda p, b: (0, 0)),      # fused weight (constant)
                pl.BlockSpec((OC, 1), lambda p, b: (0, 0)),      # gamma
                pl.BlockSpec((OC, 1), lambda p, b: (0, 0)),      # beta
            ],
            # stays at block 0 through phase 0 (no garbage write-backs), tracks b in phase 1
            out_specs=pl.BlockSpec((B_BLK, OC, OHOW), lambda p, b: (p * b, 0, 0)),
            scratch_shapes=[
                pltpu.VMEM((N, OC, OHOW), jnp.float32),   # whole-batch conv workspace
                pltpu.VMEM((OC, 1), jnp.float32),         # sum accumulator
                pltpu.VMEM((OC, 1), jnp.float32),         # sum-of-squares accumulator
            ]),
        compiler_params=pltpu.CompilerParams(
            # phase order + cross-step stat accumulation require sequential execution
            dimension_semantics=("arbitrary", "arbitrary")),
    )(xflat, wf, g2, b2)

    return out_flat.reshape(N, OC, OH, OW)                   # contiguous -> free reshape


def reference(x, weight, bias, gamma, beta, *, padding=1, stride=1, dilation=1):
    y = lax.conv_general_dilated(
        x.astype(jnp.float32), weight.astype(jnp.float32),
        window_strides=(stride, stride),
        padding=[(padding, padding), (padding, padding)],
        rhs_dilation=(dilation, dilation),
        dimension_numbers=('NCHW', 'OIHW', 'NCHW'))
    y = y + bias.reshape(1, -1, 1, 1)
    mean = jnp.mean(y, axis=(0, 2, 3), keepdims=True)
    var = jnp.mean(jnp.square(y - mean), axis=(0, 2, 3), keepdims=True)
    yhat = (y - mean) * lax.rsqrt(var + BN_EPS)
    z = yhat * gamma.reshape(1, -1, 1, 1) + beta.reshape(1, -1, 1, 1)
    return jnp.where(z > 0, z, LRELU_SLOPE * z)


if __name__ == "__main__":
    # Module config: Conv_BN_LeakyReLU(in_channels=4, out_channels=8, ksize=3, padding=1)
    N, C, H, W = 2, 4, 16, 16
    OC, KS = 8, 3
    padding, stride, dilation = 1, 1, 1

    key = jax.random.PRNGKey(0)
    kx, kw, kb, kg, kbt = jax.random.split(key, 5)
    x = jax.random.normal(kx, (N, C, H, W), dtype=jnp.float32)
    weight = jax.random.normal(kw, (OC, C, KS, KS), dtype=jnp.float32) * 0.1
    bias = jax.random.normal(kb, (OC,), dtype=jnp.float32) * 0.1
    gamma = 1.0 + 0.1 * jax.random.normal(kg, (OC,), dtype=jnp.float32)
    beta = 0.1 * jax.random.normal(kbt, (OC,), dtype=jnp.float32)

    out = conv_bn_leaky_relu(x, weight, bias, gamma, beta,
                             padding=padding, stride=stride, dilation=dilation)
    out = jax.block_until_ready(out)

    ref = reference(x, weight, bias, gamma, beta,
                    padding=padding, stride=stride, dilation=dilation)
    assert out.shape == (N, OC, H, W)
    # bf16 MXU operands (f32 accumulation/stats/epilogue): tolerance relaxed accordingly;
    # the f32-operand path of this kernel meets ~2e-4.
    assert jnp.allclose(out, ref, atol=5e-2, rtol=5e-2)
    print("KERNEL_OK")
</pallas_src>

<mosaic_0001>
module attributes {stable_mosaic.version = 11 : i64} {
  func.func @kernel(%arg0: i32, %arg1: i32, %arg2: memref<2x4x326xbf16, #tpu.memory_space<vmem>>, %arg3: memref<8x36xbf16, #tpu.memory_space<vmem>>, %arg4: memref<8x1xf32, #tpu.memory_space<vmem>>, %arg5: memref<8x1xf32, #tpu.memory_space<vmem>>, %arg6: memref<2x8x256xf32, #tpu.memory_space<vmem>>, %arg7: memref<2x8x256xf32, #tpu.memory_space<vmem>>, %arg8: memref<8x1xf32, #tpu.memory_space<vmem>>, %arg9: memref<8x1xf32, #tpu.memory_space<vmem>>) attributes {dimension_semantics = [#tpu.dimension_semantics<arbitrary>, #tpu.dimension_semantics<arbitrary>], iteration_bounds = array<i64: 2, 1>, scalar_prefetch = 0 : i64, scratch_operands = 3 : i64, tpu.core_type = #tpu.core_type<tc>, window_params = [{transform_indices = @transform_0, window_bounds = array<i64: 2, 4, 326>}, {pipeline_mode = #tpu.pipeline_mode<synchronous>, transform_indices = @transform_1, window_bounds = array<i64: 8, 36>}, {pipeline_mode = #tpu.pipeline_mode<synchronous>, transform_indices = @transform_2, window_bounds = array<i64: 8, 1>}, {pipeline_mode = #tpu.pipeline_mode<synchronous>, transform_indices = @transform_3, window_bounds = array<i64: 8, 1>}, {transform_indices = @transform_4, window_bounds = array<i64: 2, 8, 256>}]} {
    %c0_i32 = arith.constant 0 : i32
    %0 = arith.cmpi eq, %arg0, %c0_i32 : i32
    %1 = arith.extui %0 : i1 to i32
    %c0_i32_0 = arith.constant 0 : i32
    %2 = arith.cmpi ne, %1, %c0_i32_0 : i32
    scf.if %2 {
      %c0_i32_2 = arith.constant 0 : i32
      %6 = arith.cmpi eq, %arg1, %c0_i32_2 : i32
      %7 = arith.extui %6 : i1 to i32
      %c0_i32_3 = arith.constant 0 : i32
      %8 = arith.cmpi ne, %7, %c0_i32_3 : i32
      scf.if %8 {
        %cst_34 = arith.constant 0.000000e+00 : f32
        %105 = vector.broadcast %cst_34 : f32 to vector<8x1xf32>
        %c0_35 = arith.constant 0 : index
        %c0_36 = arith.constant 0 : index
        %106 = vector.load %arg8[%c0_35, %c0_36] : memref<8x1xf32, #tpu.memory_space<vmem>>, vector<8x1xf32>
        tpu.vector_store %arg8[%c0_35, %c0_36], %105 {strides = array<i32>} : memref<8x1xf32, #tpu.memory_space<vmem>>, vector<8x1xf32>,
        %cst_37 = arith.constant 0.000000e+00 : f32
        %107 = vector.broadcast %cst_37 : f32 to vector<8x1xf32>
        %c0_38 = arith.constant 0 : index
        %c0_39 = arith.constant 0 : index
        %108 = vector.load %arg9[%c0_38, %c0_39] : memref<8x1xf32, #tpu.memory_space<vmem>>, vector<8x1xf32>
        tpu.vector_store %arg9[%c0_38, %c0_39], %107 {strides = array<i32>} : memref<8x1xf32, #tpu.memory_space<vmem>>, vector<8x1xf32>,
      } else {
      }
      %cst = arith.constant 0.000000e+00 : f32
      %9 = vector.broadcast %cst : f32 to vector<8x1xf32>
      %cst_4 = arith.constant 0.000000e+00 : f32
      %10 = vector.broadcast %cst_4 : f32 to vector<8x1xf32>
      %c0 = arith.constant 0 : index
      %c0_5 = arith.constant 0 : index
      %c0_6 = arith.constant 0 : index
      %11 = vector.load %arg2[%c0, %c0_5, %c0_6] : memref<2x4x326xbf16, #tpu.memory_space<vmem>>, vector<1x4x326xbf16>
      %12 = vector.shape_cast %11 : vector<1x4x326xbf16> to vector<4x326xbf16>
      %13 = vector.extract_strided_slice %12 {offsets = [0, 0], sizes = [4, 288], strides = [1, 1]} : vector<4x326xbf16> to vector<4x288xbf16>
      %14 = vector.extract_strided_slice %12 {offsets = [0, 1], sizes = [4, 288], strides = [1, 1]} : vector<4x326xbf16> to vector<4x288xbf16>
      %15 = vector.extract_strided_slice %12 {offsets = [0, 2], sizes = [4, 288], strides = [1, 1]} : vector<4x326xbf16> to vector<4x288xbf16>
      %16 = vector.extract_strided_slice %12 {offsets = [0, 18], sizes = [4, 288], strides = [1, 1]} : vector<4x326xbf16> to vector<4x288xbf16>
      %17 = vector.extract_strided_slice %12 {offsets = [0, 19], sizes = [4, 288], strides = [1, 1]} : vector<4x326xbf16> to vector<4x288xbf16>
      %18 = vector.extract_strided_slice %12 {offsets = [0, 20], sizes = [4, 288], strides = [1, 1]} : vector<4x326xbf16> to vector<4x288xbf16>
      %19 = vector.extract_strided_slice %12 {offsets = [0, 36], sizes = [4, 288], strides = [1, 1]} : vector<4x326xbf16> to vector<4x288xbf16>
      %20 = vector.extract_strided_slice %12 {offsets = [0, 37], sizes = [4, 288], strides = [1, 1]} : vector<4x326xbf16> to vector<4x288xbf16>
      %21 = vector.extract_strided_slice %12 {offsets = [0, 38], sizes = [4, 288], strides = [1, 1]} : vector<4x326xbf16> to vector<4x288xbf16>
      %22 = tpu.concatenate %13, %14, %15, %16, %17, %18, %19, %20, %21 in 0 : vector<4x288xbf16>, vector<4x288xbf16>, vector<4x288xbf16>, vector<4x288xbf16>, vector<4x288xbf16>, vector<4x288xbf16>, vector<4x288xbf16>, vector<4x288xbf16>, vector<4x288xbf16> -> vector<36x288xbf16>
      %c0_7 = arith.constant 0 : index
      %c0_8 = arith.constant 0 : index
      %23 = vector.load %arg3[%c0_7, %c0_8] : memref<8x36xbf16, #tpu.memory_space<vmem>>, vector<8x36xbf16>
      %cst_9 = arith.constant dense<0.000000e+00> : vector<8x288xf32>
      %24 = tpu.matmul %23, %22, %cst_9 {dimension_numbers = #tpu.dot_dimension_numbers<[1], [0], [0], [1], [0, 0, 1, 1], [], []>} : vector<8x36xbf16>, vector<36x288xbf16>, vector<8x288xf32> -> vector<8x288xf32>
      %25 = vector.extract_strided_slice %24 {offsets = [0, 0], sizes = [8, 16], strides = [1, 1]} : vector<8x288xf32> to vector<8x16xf32>
      %26 = vector.extract_strided_slice %24 {offsets = [0, 18], sizes = [8, 16], strides = [1, 1]} : vector<8x288xf32> to vector<8x16xf32>
      %27 = vector.extract_strided_slice %24 {offsets = [0, 36], sizes = [8, 16], strides = [1, 1]} : vector<8x288xf32> to vector<8x16xf32>
      %28 = vector.extract_strided_slice %24 {offsets = [0, 54], sizes = [8, 16], strides = [1, 1]} : vector<8x288xf32> to vector<8x16xf32>
      %29 = vector.extract_strided_slice %24 {offsets = [0, 72], sizes = [8, 16], strides = [1, 1]} : vector<8x288xf32> to vector<8x16xf32>
      %30 = vector.extract_strided_slice %24 {offsets = [0, 90], sizes = [8, 16], strides = [1, 1]} : vector<8x288xf32> to vector<8x16xf32>
      %31 = vector.extract_strided_slice %24 {offsets = [0, 108], sizes = [8, 16], strides = [1, 1]} : vector<8x288xf32> to vector<8x16xf32>
      %32 = vector.extract_strided_slice %24 {offsets = [0, 126], sizes = [8, 16], strides = [1, 1]} : vector<8x288xf32> to vector<8x16xf32>
      %33 = vector.extract_strided_slice %24 {offsets = [0, 144], sizes = [8, 16], strides = [1, 1]} : vector<8x288xf32> to vector<8x16xf32>
      %34 = vector.extract_strided_slice %24 {offsets = [0, 162], sizes = [8, 16], strides = [1, 1]} : vector<8x288xf32> to vector<8x16xf32>
      %35 = vector.extract_strided_slice %24 {offsets = [0, 180], sizes = [8, 16], strides = [1, 1]} : vector<8x288xf32> to vector<8x16xf32>
      %36 = vector.extract_strided_slice %24 {offsets = [0, 198], sizes = [8, 16], strides = [1, 1]} : vector<8x288xf32> to vector<8x16xf32>
      %37 = vector.extract_strided_slice %24 {offsets = [0, 216], sizes = [8, 16], strides = [1, 1]} : vector<8x288xf32> to vector<8x16xf32>
      %38 = vector.extract_strided_slice %24 {offsets = [0, 234], sizes = [8, 16], strides = [1, 1]} : vector<8x288xf32> to vector<8x16xf32>
      %39 = vector.extract_strided_slice %24 {offsets = [0, 252], sizes = [8, 16], strides = [1, 1]} : vector<8x288xf32> to vector<8x16xf32>
      %40 = vector.extract_strided_slice %24 {offsets = [0, 270], sizes = [8, 16], strides = [1, 1]} : vector<8x288xf32> to vector<8x16xf32>
      %41 = tpu.concatenate %25, %26, %27, %28, %29, %30, %31, %32, %33, %34, %35, %36, %37, %38, %39, %40 in 1 : vector<8x16xf32>, vector<8x16xf32>, vector<8x16xf32>, vector<8x16xf32>, vector<8x16xf32>, vector<8x16xf32>, vector<8x16xf32>, vector<8x16xf32>, vector<8x16xf32>, vector<8x16xf32>, vector<8x16xf32>, vector<8x16xf32>, vector<8x16xf32>, vector<8x16xf32>, vector<8x16xf32>, vector<8x16xf32> -> vector<8x256xf32>
      %c2_i32 = arith.constant 2 : i32
      %42 = arith.muli %arg1, %c2_i32 : i32
      %c0_i32_10 = arith.constant 0 : i32
      %43 = arith.addi %42, %c0_i32_10 : i32
      %44 = arith.index_cast %43 : i32 to index
      %c0_11 = arith.constant 0 : index
      %c0_12 = arith.constant 0 : index
      %45 = vector.load %arg7[%44, %c0_11, %c0_12] : memref<2x8x256xf32, #tpu.memory_space<vmem>>, vector<1x8x256xf32>
      %46 = vector.shape_cast %45 : vector<1x8x256xf32> to vector<8x256xf32>
      %47 = vector.shape_cast %41 : vector<8x256xf32> to vector<1x8x256xf32>
      tpu.vector_store %arg7[%44, %c0_11, %c0_12], %47 {strides = array<i32>} : memref<2x8x256xf32, #tpu.memory_space<vmem>>, vector<1x8x256xf32>,
      %cst_13 = arith.constant dense<0.000000e+00> : vector<8xf32>
      %48 = vector.multi_reduction <add>, %41, %cst_13 [1] : vector<8x256xf32> to vector<8xf32>
      %49 = vector.shape_cast %48 : vector<8xf32> to vector<8x1xf32>
      %50 = arith.addf %9, %49 : vector<8x1xf32>
      %51 = arith.mulf %41, %41 : vector<8x256xf32>
      %cst_14 = arith.constant dense<0.000000e+00> : vector<8xf32>
      %52 = vector.multi_reduction <add>, %51, %cst_14 [1] : vector<8x256xf32> to vector<8xf32>
      %53 = vector.shape_cast %52 : vector<8xf32> to vector<8x1xf32>
      %54 = arith.addf %10, %53 : vector<8x1xf32>
      %c1 = arith.constant 1 : index
      %c0_15 = arith.constant 0 : index
      %c0_16 = arith.constant 0 : index
      %55 = vector.load %arg2[%c1, %c0_15, %c0_16] : memref<2x4x326xbf16, #tpu.memory_space<vmem>>, vector<1x4x326xbf16>
      %56 = vector.shape_cast %55 : vector<1x4x326xbf16> to vector<4x326xbf16>
      %57 = vector.extract_strided_slice %56 {offsets = [0, 0], sizes = [4, 288], strides = [1, 1]} : vector<4x326xbf16> to vector<4x288xbf16>
      %58 = vector.extract_strided_slice %56 {offsets = [0, 1], sizes = [4, 288], strides = [1, 1]} : vector<4x326xbf16> to vector<4x288xbf16>
      %59 = vector.extract_strided_slice %56 {offsets = [0, 2], sizes = [4, 288], strides = [1, 1]} : vector<4x326xbf16> to vector<4x288xbf16>
      %60 = vector.extract_strided_slice %56 {offsets = [0, 18], sizes = [4, 288], strides = [1, 1]} : vector<4x326xbf16> to vector<4x288xbf16>
      %61 = vector.extract_strided_slice %56 {offsets = [0, 19], sizes = [4, 288], strides = [1, 1]} : vector<4x326xbf16> to vector<4x288xbf16>
      %62 = vector.extract_strided_slice %56 {offsets = [0, 20], sizes = [4, 288], strides = [1, 1]} : vector<4x326xbf16> to vector<4x288xbf16>
      %63 = vector.extract_strided_slice %56 {offsets = [0, 36], sizes = [4, 288], strides = [1, 1]} : vector<4x326xbf16> to vector<4x288xbf16>
      %64 = vector.extract_strided_slice %56 {offsets = [0, 37], sizes = [4, 288], strides = [1, 1]} : vector<4x326xbf16> to vector<4x288xbf16>
      %65 = vector.extract_strided_slice %56 {offsets = [0, 38], sizes = [4, 288], strides = [1, 1]} : vector<4x326xbf16> to vector<4x288xbf16>
      %66 = tpu.concatenate %57, %58, %59, %60, %61, %62, %63, %64, %65 in 0 : vector<4x288xbf16>, vector<4x288xbf16>, vector<4x288xbf16>, vector<4x288xbf16>, vector<4x288xbf16>, vector<4x288xbf16>, vector<4x288xbf16>, vector<4x288xbf16>, vector<4x288xbf16> -> vector<36x288xbf16>
      %c0_17 = arith.constant 0 : index
      %c0_18 = arith.constant 0 : index
      %67 = vector.load %arg3[%c0_17, %c0_18] : memref<8x36xbf16, #tpu.memory_space<vmem>>, vector<8x36xbf16>
      %cst_19 = arith.constant dense<0.000000e+00> : vector<8x288xf32>
      %68 = tpu.matmul %67, %66, %cst_19 {dimension_numbers = #tpu.dot_dimension_numbers<[1], [0], [0], [1], [0, 0, 1, 1], [], []>} : vector<8x36xbf16>, vector<36x288xbf16>, vector<8x288xf32> -> vector<8x288xf32>
      %69 = vector.extract_strided_slice %68 {offsets = [0, 0], sizes = [8, 16], strides = [1, 1]} : vector<8x288xf32> to vector<8x16xf32>
      %70 = vector.extract_strided_slice %68 {offsets = [0, 18], sizes = [8, 16], strides = [1, 1]} : vector<8x288xf32> to vector<8x16xf32>
      %71 = vector.extract_strided_slice %68 {offsets = [0, 36], sizes = [8, 16], strides = [1, 1]} : vector<8x288xf32> to vector<8x16xf32>
      %72 = vector.extract_strided_slice %68 {offsets = [0, 54], sizes = [8, 16], strides = [1, 1]} : vector<8x288xf32> to vector<8x16xf32>
      %73 = vector.extract_strided_slice %68 {offsets = [0, 72], sizes = [8, 16], strides = [1, 1]} : vector<8x288xf32> to vector<8x16xf32>
      %74 = vector.extract_strided_slice %68 {offsets = [0, 90], sizes = [8, 16], strides = [1, 1]} : vector<8x288xf32> to vector<8x16xf32>
      %75 = vector.extract_strided_slice %68 {offsets = [0, 108], sizes = [8, 16], strides = [1, 1]} : vector<8x288xf32> to vector<8x16xf32>
      %76 = vector.extract_strided_slice %68 {offsets = [0, 126], sizes = [8, 16], strides = [1, 1]} : vector<8x288xf32> to vector<8x16xf32>
      %77 = vector.extract_strided_slice %68 {offsets = [0, 144], sizes = [8, 16], strides = [1, 1]} : vector<8x288xf32> to vector<8x16xf32>
      %78 = vector.extract_strided_slice %68 {offsets = [0, 162], sizes = [8, 16], strides = [1, 1]} : vector<8x288xf32> to vector<8x16xf32>
      %79 = vector.extract_strided_slice %68 {offsets = [0, 180], sizes = [8, 16], strides = [1, 1]} : vector<8x288xf32> to vector<8x16xf32>
      %80 = vector.extract_strided_slice %68 {offsets = [0, 198], sizes = [8, 16], strides = [1, 1]} : vector<8x288xf32> to vector<8x16xf32>
      %81 = vector.extract_strided_slice %68 {offsets = [0, 216], sizes = [8, 16], strides = [1, 1]} : vector<8x288xf32> to vector<8x16xf32>
      %82 = vector.extract_strided_slice %68 {offsets = [0, 234], sizes = [8, 16], strides = [1, 1]} : vector<8x288xf32> to vector<8x16xf32>
      %83 = vector.extract_strided_slice %68 {offsets = [0, 252], sizes = [8, 16], strides = [1, 1]} : vector<8x288xf32> to vector<8x16xf32>
      %84 = vector.extract_strided_slice %68 {offsets = [0, 270], sizes = [8, 16], strides = [1, 1]} : vector<8x288xf32> to vector<8x16xf32>
      %85 = tpu.concatenate %69, %70, %71, %72, %73, %74, %75, %76, %77, %78, %79, %80, %81, %82, %83, %84 in 1 : vector<8x16xf32>, vector<8x16xf32>, vector<8x16xf32>, vector<8x16xf32>, vector<8x16xf32>, vector<8x16xf32>, vector<8x16xf32>, vector<8x16xf32>, vector<8x16xf32>, vector<8x16xf32>, vector<8x16xf32>, vector<8x16xf32>, vector<8x16xf32>, vector<8x16xf32>, vector<8x16xf32>, vector<8x16xf32> -> vector<8x256xf32>
      %c2_i32_20 = arith.constant 2 : i32
      %86 = arith.muli %arg1, %c2_i32_20 : i32
      %c1_i32_21 = arith.constant 1 : i32
      %87 = arith.addi %86, %c1_i32_21 : i32
      %88 = arith.index_cast %87 : i32 to index
      %c0_22 = arith.constant 0 : index
      %c0_23 = arith.constant 0 : index
      %89 = vector.load %arg7[%88, %c0_22, %c0_23] : memref<2x8x256xf32, #tpu.memory_space<vmem>>, vector<1x8x256xf32>
      %90 = vector.shape_cast %89 : vector<1x8x256xf32> to vector<8x256xf32>
      %91 = vector.shape_cast %85 : vector<8x256xf32> to vector<1x8x256xf32>
      tpu.vector_store %arg7[%88, %c0_22, %c0_23], %91 {strides = array<i32>} : memref<2x8x256xf32, #tpu.memory_space<vmem>>, vector<1x8x256xf32>,
      %cst_24 = arith.constant dense<0.000000e+00> : vector<8xf32>
      %92 = vector.multi_reduction <add>, %85, %cst_24 [1] : vector<8x256xf32> to vector<8xf32>
      %93 = vector.shape_cast %92 : vector<8xf32> to vector<8x1xf32>
      %94 = arith.addf %50, %93 : vector<8x1xf32>
      %95 = arith.mulf %85, %85 : vector<8x256xf32>
      %cst_25 = arith.constant dense<0.000000e+00> : vector<8xf32>
      %96 = vector.multi_reduction <add>, %95, %cst_25 [1] : vector<8x256xf32> to vector<8xf32>
      %97 = vector.shape_cast %96 : vector<8xf32> to vector<8x1xf32>
      %98 = arith.addf %54, %97 : vector<8x1xf32>
      %c0_26 = arith.constant 0 : index
      %c0_27 = arith.constant 0 : index
      %99 = vector.load %arg8[%c0_26, %c0_27] : memref<8x1xf32, #tpu.memory_space<vmem>>, vector<8x1xf32>
      %100 = arith.addf %99, %94 : vector<8x1xf32>
      %c0_28 = arith.constant 0 : index
      %c0_29 = arith.constant 0 : index
      %101 = vector.load %arg8[%c0_28, %c0_29] : memref<8x1xf32, #tpu.memory_space<vmem>>, vector<8x1xf32>
      tpu.vector_store %arg8[%c0_28, %c0_29], %100 {strides = array<i32>} : memref<8x1xf32, #tpu.memory_space<vmem>>, vector<8x1xf32>,
      %c0_30 = arith.constant 0 : index
      %c0_31 = arith.constant 0 : index
      %102 = vector.load %arg9[%c0_30, %c0_31] : memref<8x1xf32, #tpu.memory_space<vmem>>, vector<8x1xf32>
      %103 = arith.addf %102, %98 : vector<8x1xf32>
      %c0_32 = arith.constant 0 : index
      %c0_33 = arith.constant 0 : index
      %104 = vector.load %arg9[%c0_32, %c0_33] : memref<8x1xf32, #tpu.memory_space<vmem>>, vector<8x1xf32>
      tpu.vector_store %arg9[%c0_32, %c0_33], %103 {strides = array<i32>} : memref<8x1xf32, #tpu.memory_space<vmem>>, vector<8x1xf32>,
    } else {
    }
    %c1_i32 = arith.constant 1 : i32
    %3 = arith.cmpi eq, %arg0, %c1_i32 : i32
    %4 = arith.extui %3 : i1 to i32
    %c0_i32_1 = arith.constant 0 : i32
    %5 = arith.cmpi ne, %4, %c0_i32_1 : i32
    scf.if %5 {
      %c0 = arith.constant 0 : index
      %c0_2 = arith.constant 0 : index
      %6 = vector.load %arg8[%c0, %c0_2] : memref<8x1xf32, #tpu.memory_space<vmem>>, vector<8x1xf32>
      %cst = arith.constant 0.001953125 : f32
      %7 = vector.broadcast %cst : f32 to vector<8x1xf32>
      %8 = arith.mulf %6, %7 : vector<8x1xf32>
      %c0_3 = arith.constant 0 : index
      %c0_4 = arith.constant 0 : index
      %9 = vector.load %arg9[%c0_3, %c0_4] : memref<8x1xf32, #tpu.memory_space<vmem>>, vector<8x1xf32>
      %cst_5 = arith.constant 0.001953125 : f32
      %10 = vector.broadcast %cst_5 : f32 to vector<8x1xf32>
      %11 = arith.mulf %9, %10 : vector<8x1xf32>
      %12 = arith.mulf %8, %8 : vector<8x1xf32>
      %13 = arith.subf %11, %12 : vector<8x1xf32>
      %cst_6 = arith.constant 0.000000e+00 : f32
      %14 = vector.broadcast %cst_6 : f32 to vector<8x1xf32>
      %15 = arith.maximumf %13, %14 : vector<8x1xf32>
      %c0_7 = arith.constant 0 : index
      %c0_8 = arith.constant 0 : index
      %16 = vector.load %arg4[%c0_7, %c0_8] : memref<8x1xf32, #tpu.memory_space<vmem>>, vector<8x1xf32>
      %cst_9 = arith.constant 9.99999974E-6 : f32
      %17 = vector.broadcast %cst_9 : f32 to vector<8x1xf32>
      %18 = arith.addf %15, %17 : vector<8x1xf32>
      %19 = math.rsqrt %18 : vector<8x1xf32>
      %20 = arith.mulf %16, %19 : vector<8x1xf32>
      %c0_10 = arith.constant 0 : index
      %c0_11 = arith.constant 0 : index
      %21 = vector.load %arg5[%c0_10, %c0_11] : memref<8x1xf32, #tpu.memory_space<vmem>>, vector<8x1xf32>
      %22 = arith.mulf %8, %20 : vector<8x1xf32>
      %23 = arith.subf %21, %22 : vector<8x1xf32>
      %c2_i32 = arith.constant 2 : i32
      %24 = arith.muli %arg1, %c2_i32 : i32
      %c0_i32_12 = arith.constant 0 : i32
      %25 = arith.addi %24, %c0_i32_12 : i32
      %26 = arith.index_cast %25 : i32 to index
      %c0_13 = arith.constant 0 : index
      %c0_14 = arith.constant 0 : index
      %27 = vector.load %arg7[%26, %c0_13, %c0_14] : memref<2x8x256xf32, #tpu.memory_space<vmem>>, vector<1x8x256xf32>
      %28 = vector.shape_cast %27 : vector<1x8x256xf32> to vector<8x256xf32>
      %29 = vector.broadcast %20 : vector<8x1xf32> to vector<8x256xf32>
      %30 = arith.mulf %28, %29 : vector<8x256xf32>
      %31 = vector.broadcast %23 : vector<8x1xf32> to vector<8x256xf32>
      %32 = arith.addf %30, %31 : vector<8x256xf32>
      %cst_15 = arith.constant 0.000000e+00 : f32
      %33 = vector.broadcast %cst_15 : f32 to vector<8x256xf32>
      %34 = arith.cmpf ogt, %32, %33 : vector<8x256xf32>
      %cst_16 = arith.constant 1.000000e-01 : f32
      %35 = vector.broadcast %cst_16 : f32 to vector<8x256xf32>
      %36 = arith.mulf %35, %32 : vector<8x256xf32>
      %37 = arith.select %34, %32, %36 : vector<8x256xi1>, vector<8x256xf32>
      %c0_17 = arith.constant 0 : index
      %c0_18 = arith.constant 0 : index
      %c0_19 = arith.constant 0 : index
      %38 = vector.load %arg6[%c0_17, %c0_18, %c0_19] : memref<2x8x256xf32, #tpu.memory_space<vmem>>, vector<1x8x256xf32>
      %39 = vector.shape_cast %38 : vector<1x8x256xf32> to vector<8x256xf32>
      %40 = vector.shape_cast %37 : vector<8x256xf32> to vector<1x8x256xf32>
      tpu.vector_store %arg6[%c0_17, %c0_18, %c0_19], %40 {strides = array<i32>} : memref<2x8x256xf32, #tpu.memory_space<vmem>>, vector<1x8x256xf32>,
      %c2_i32_20 = arith.constant 2 : i32
      %41 = arith.muli %arg1, %c2_i32_20 : i32
      %c1_i32_21 = arith.constant 1 : i32
      %42 = arith.addi %41, %c1_i32_21 : i32
      %43 = arith.index_cast %42 : i32 to index
      %c0_22 = arith.constant 0 : index
      %c0_23 = arith.constant 0 : index
      %44 = vector.load %arg7[%43, %c0_22, %c0_23] : memref<2x8x256xf32, #tpu.memory_space<vmem>>, vector<1x8x256xf32>
      %45 = vector.shape_cast %44 : vector<1x8x256xf32> to vector<8x256xf32>
      %46 = vector.broadcast %20 : vector<8x1xf32> to vector<8x256xf32>
      %47 = arith.mulf %45, %46 : vector<8x256xf32>
      %48 = vector.broadcast %23 : vector<8x1xf32> to vector<8x256xf32>
      %49 = arith.addf %47, %48 : vector<8x256xf32>
      %cst_24 = arith.constant 0.000000e+00 : f32
      %50 = vector.broadcast %cst_24 : f32 to vector<8x256xf32>
      %51 = arith.cmpf ogt, %49, %50 : vector<8x256xf32>
      %cst_25 = arith.constant 1.000000e-01 : f32
      %52 = vector.broadcast %cst_25 : f32 to vector<8x256xf32>
      %53 = arith.mulf %52, %49 : vector<8x256xf32>
      %54 = arith.select %51, %49, %53 : vector<8x256xi1>, vector<8x256xf32>
      %c1 = arith.constant 1 : index
      %c0_26 = arith.constant 0 : index
      %c0_27 = arith.constant 0 : index
      %55 = vector.load %arg6[%c1, %c0_26, %c0_27] : memref<2x8x256xf32, #tpu.memory_space<vmem>>, vector<1x8x256xf32>
      %56 = vector.shape_cast %55 : vector<1x8x256xf32> to vector<8x256xf32>
      %57 = vector.shape_cast %54 : vector<8x256xf32> to vector<1x8x256xf32>
      tpu.vector_store %arg6[%c1, %c0_26, %c0_27], %57 {strides = array<i32>} : memref<2x8x256xf32, #tpu.memory_space<vmem>>, vector<1x8x256xf32>,
    } else {
    }
    return
  }
  func.func @transform_0(%arg0: i32, %arg1: i32) -> (i32, i32, i32) {
    %c1_i32 = arith.constant 1 : i32
    %0 = arith.subi %c1_i32, %arg0 : i32
    %1 = arith.muli %0, %arg1 : i32
    %c0_i32 = arith.constant 0 : i32
    %2 = arith.muli %arg0, %c0_i32 : i32
    %3 = arith.addi %1, %2 : i32
    %c0_i32_0 = arith.constant 0 : i32
    %c0_i32_1 = arith.constant 0 : i32
    %c0_i32_2 = arith.constant 0 : i32
    return %3, %c0_i32_0, %c0_i32_1 : i32, i32, i32
  }
  func.func @transform_1(%arg0: i32, %arg1: i32) -> (i32, i32) {
    %c0_i32 = arith.constant 0 : i32
    %c0_i32_0 = arith.constant 0 : i32
    %c0_i32_1 = arith.constant 0 : i32
    return %c0_i32, %c0_i32_0 : i32, i32
  }
  func.func @transform_2(%arg0: i32, %arg1: i32) -> (i32, i32) {
    %c0_i32 = arith.constant 0 : i32
    %c0_i32_0 = arith.constant 0 : i32
    %c0_i32_1 = arith.constant 0 : i32
    return %c0_i32, %c0_i32_0 : i32, i32
  }
  func.func @transform_3(%arg0: i32, %arg1: i32) -> (i32, i32) {
    %c0_i32 = arith.constant 0 : i32
    %c0_i32_0 = arith.constant 0 : i32
    %c0_i32_1 = arith.constant 0 : i32
    return %c0_i32, %c0_i32_0 : i32, i32
  }
  func.func @transform_4(%arg0: i32, %arg1: i32) -> (i32, i32, i32) {
    %0 = arith.muli %arg0, %arg1 : i32
    %c0_i32 = arith.constant 0 : i32
    %c0_i32_0 = arith.constant 0 : i32
    %c0_i32_1 = arith.constant 0 : i32
    return %0, %c0_i32, %c0_i32_0 : i32, i32, i32
  }
}

</mosaic_0001>

<llo_original>
// kernel: tpu_custom_call.1
$region0: #{tpu_custom_call.1}
  #allocation0 [shape = 'u32[]', space=smem, size = 0x4, offset = 0x4, fixed_abs, tag = 'smem constant byte address 0x4 - core index']
  #allocation1 [shape = 'u32[72,128]{1,0:T(1,128)}', space=vmem, size = 0x9000, scoped, tag = 'internal scratch']
  #allocation2 [shape = 'f32[2,8,256]{2,1,0:T(8,128)}', space=vmem, size = 0x4000, scoped, tag = 'scratch operand']
  #allocation3 [shape = 'f32[8,1]{1,0:T(8,128)}', space=vmem, size = 0x1000, scoped, tag = 'scratch operand']
  #allocation4 [shape = 'f32[8,1]{1,0:T(8,128)}', space=vmem, size = 0x1000, scoped, tag = 'scratch operand']
  %s0 = inlined_call_operand.vmem [shape: bf16[2,4,326], index: 0, kind: input, shape index: {}]
  %s1 = inlined_call_operand.vmem [shape: bf16[8,36], index: 1, kind: input, shape index: {}]
  %s2 = inlined_call_operand.vmem [shape: f32[8,1], index: 2, kind: input, shape index: {}]
  %s3 = inlined_call_operand.vmem [shape: f32[8,1], index: 3, kind: input, shape index: {}]
  %s4 = inlined_call_operand.hbm [shape: f32[2,8,256], index: 4, kind: output, shape index: {}]
  %s5 = sld [smem:[#allocation0]]
  $region61: #{tpu_custom_call.1} parent=0
    _
  %s7 = ssub.s32 1, %s5
  %s8 = scalar_select 0, %s7, %s5
  $region1: #{tpu_custom_call.1} parent=0
    #allocation5 [shape = 'u8[32768]{0}', space=vmem, size = 0x8000, scoped, tag = 'output window, operand 0']
    #allocation6 [shape = 's32[2]{0}', space=sflag, size = 0x8, scoped, tag = 'scoped memory for tpu_custom_call.1']
    %9 = vsyncpa [#allocation6], 0
    %s10 = scalar_lea.sflag [#allocation6], 1
    %11 = vsyncpa %s10, 0
    loop: start=0, step=1, limit=4
    $region2: #{tpu_custom_call.1} parent=1 // loop_pre_header
      _
    $region3: #{tpu_custom_call.1} parent=1 // loop_header
      %s13 = sphi 0, %s17
      %p14 = scmp.ge.s32.totalorder %s13, 4
      %s20 = sphi 0, %s32
      %s21 = sphi 0, %s28
      %s22 = sphi 0, %s20
      %s23 = sphi 0, %s21
      %s24 = sphi 0, %s22
      %s25 = sphi 0, %s23
      %s39 = sphi 0, %s41
      %s42 = sphi 0, %s39
      %s43 = sphi 0, %s42
      %s59 = sphi 0, %s43
      %s63 = sphi 0, %s63
      %s65 = sphi 0, %s63
      %s66 = sphi 0, %s65
      %s80 = sphi 0, %s66
      %s84 = sphi 0, %s84
      %s86 = sphi 0, %s84
      %s87 = sphi 0, %s86
      %s101 = sphi 0, %s87
      %s105 = sphi 0, %s105
      %s107 = sphi 0, %s105
      %s108 = sphi 0, %s107
      %s122 = sphi 0, %s108
      %s130 = sphi 0, %s132
      %s133 = sphi 0, %s130
      %s134 = sphi 0, %s133
      %s150 = sphi 0, %s134
    $region4: #{tpu_custom_call.1} parent=1 // loop_header_branch
      %16 = sbr.rel (%p14) target = $region8
    $region5: #{tpu_custom_call.1} parent=1 // loop_body
      %s18 = ssub.s32 %s13, 1
      %s19 = ssub.s32 %s13, 2
      %s26 = sadd.s32 1, %s21
      %p27 = scmp.ge.s32.totalorder %s26, 1
      %s28 = scalar_select %p27, 0, %s26
      %s29 = sadd.s32 1, %s20
      %s30 = scalar_select %p27, %s29, %s20
      %p31 = scmp.ge.s32.totalorder %s30, 2
      %s32 = scalar_select %p31, 0, %s30
      %s33 = ssub.s32 1, %s20
      %s34 = smul.u32 %s33, %s21
      %s35 = ssub.s32 1, %s32
      %s36 = smul.u32 %s35, %s28
      %s37 = ssub.s32 %s34, %s36
      %p38 = scmp.eq.s32.totalorder %s37, 0
      %s40 = sadd.s32 %s39, 1
      %s41 = scalar_select %p38, %s39, %s40
      %p44 = pneg %p38
      %p45 = scmp.eq.s32.totalorder %s13, 1
      %p46 = por %p44, %p45
      %p47 = scmp.ne.s32.totalorder %s39, %s42
      %p48 = scmp.eq.s32.totalorder %s13, 0
      %p49 = por %p47, %p48
      %p50 = scmp.ne.s32.totalorder %s39, %s42
      %p51 = scmp.eq.s32.totalorder %s18, 1
      %p52 = por %p50, %p51
      %p53 = scmp.ne.s32.totalorder %s42, %s43
      %p54 = scmp.eq.s32.totalorder %s18, 0
      %p55 = por %p53, %p54
      %p56 = scmp.ne.s32.totalorder %s42, %s43
      %p57 = scmp.eq.s32.totalorder %s19, 1
      %p58 = por %p56, %p57
      %p60 = scmp.ne.s32.totalorder %s43, %s59
      %p61 = scmp.eq.s32.totalorder %s19, 0
      %p62 = por %p60, %p61
      %s64 = sadd.s32 %s63, 1
      %p67 = scmp.eq.s32.totalorder %s13, 1
      %p68 = scmp.ne.s32.totalorder %s63, %s65
      %p69 = scmp.eq.s32.totalorder %s13, 0
      %p70 = por %p68, %p69
      %p71 = scmp.ne.s32.totalorder %s63, %s65
      %p72 = scmp.eq.s32.totalorder %s18, 1
      %p73 = por %p71, %p72
      %p74 = scmp.ne.s32.totalorder %s65, %s66
      %p75 = scmp.eq.s32.totalorder %s18, 0
      %p76 = por %p74, %p75
      %p77 = scmp.ne.s32.totalorder %s65, %s66
      %p78 = scmp.eq.s32.totalorder %s19, 1
      %p79 = por %p77, %p78
      %p81 = scmp.ne.s32.totalorder %s66, %s80
      %p82 = scmp.eq.s32.totalorder %s19, 0
      %p83 = por %p81, %p82
      %s85 = sadd.s32 %s84, 1
      %p88 = scmp.eq.s32.totalorder %s13, 1
      %p89 = scmp.ne.s32.totalorder %s84, %s86
      %p90 = scmp.eq.s32.totalorder %s13, 0
      %p91 = por %p89, %p90
      %p92 = scmp.ne.s32.totalorder %s84, %s86
      %p93 = scmp.eq.s32.totalorder %s18, 1
      %p94 = por %p92, %p93
      %p95 = scmp.ne.s32.totalorder %s86, %s87
      %p96 = scmp.eq.s32.totalorder %s18, 0
      %p97 = por %p95, %p96
      %p98 = scmp.ne.s32.totalorder %s86, %s87
      %p99 = scmp.eq.s32.totalorder %s19, 1
      %p100 = por %p98, %p99
      %p102 = scmp.ne.s32.totalorder %s87, %s101
      %p103 = scmp.eq.s32.totalorder %s19, 0
      %p104 = por %p102, %p103
      %s106 = sadd.s32 %s105, 1
      %p109 = scmp.eq.s32.totalorder %s13, 1
      %p110 = scmp.ne.s32.totalorder %s105, %s107
      %p111 = scmp.eq.s32.totalorder %s13, 0
      %p112 = por %p110, %p111
      %p113 = scmp.ne.s32.totalorder %s105, %s107
      %p114 = scmp.eq.s32.totalorder %s18, 1
      %p115 = por %p113, %p114
      %p116 = scmp.ne.s32.totalorder %s107, %s108
      %p117 = scmp.eq.s32.totalorder %s18, 0
      %p118 = por %p116, %p117
      %p119 = scmp.ne.s32.totalorder %s107, %s108
      %p120 = scmp.eq.s32.totalorder %s19, 1
      %p121 = por %p119, %p120
      %p123 = scmp.ne.s32.totalorder %s108, %s122
      %p124 = scmp.eq.s32.totalorder %s19, 0
      %p125 = por %p123, %p124
      %s126 = smul.u32 %s20, %s21
      %s127 = smul.u32 %s32, %s28
      %s128 = ssub.s32 %s126, %s127
      %p129 = scmp.eq.s32.totalorder %s128, 0
      %s131 = sadd.s32 %s130, 1
      %s132 = scalar_select %p129, %s130, %s131
      %p135 = pneg %p129
      %p136 = scmp.eq.s32.totalorder %s13, 1
      %p137 = por %p135, %p136
      %p138 = scmp.ne.s32.totalorder %s130, %s133
      %p139 = scmp.eq.s32.totalorder %s13, 0
      %p140 = por %p138, %p139
      %p141 = scmp.ne.s32.totalorder %s130, %s133
      %p142 = scmp.eq.s32.totalorder %s18, 1
      %p143 = por %p141, %p142
      %p144 = scmp.ne.s32.totalorder %s133, %s134
      %p145 = scmp.eq.s32.totalorder %s18, 0
      %p146 = por %p144, %p145
      %p147 = scmp.ne.s32.totalorder %s133, %s134
      %p148 = scmp.eq.s32.totalorder %s19, 1
      %p149 = por %p147, %p148
      %p151 = scmp.ne.s32.totalorder %s134, %s150
      %p152 = scmp.eq.s32.totalorder %s19, 0
      %p153 = por %p151, %p152
      %p154 = scmp.le.s32.totalorder 1, %s13
      %p155 = scmp.lt.s32.totalorder %s13, 3
      %p156 = pnand %p154, %p155
      %p157 = pneg %p156
      // Predicated region
      $region9: #{tpu_custom_call.1} parent=5 // pred_check
        _
      $region10: #{tpu_custom_call.1} parent=5 // pred_check_branch
        %159 = sbr.rel (%p156) target = $region12
      $region11: #{tpu_custom_call.1} parent=5 // pred_region
        %s160 = ssub.s32 %s13, 1
        // Predicated region
        $region13: #{tpu_custom_call.1} parent=11 // pred_check
          %p161 = pneg %p76
        $region14: #{tpu_custom_call.1} parent=11 // pred_check_branch
          %163 = sbr.rel (%p161) target = $region16
        $region15: #{tpu_custom_call.1} parent=11 // pred_region
          _
        $region16: #{tpu_custom_call.1} parent=11 // pred_fallthru
          _
        // Predicated region
        $region17: #{tpu_custom_call.1} parent=11 // pred_check
          %p164 = pneg %p97
        $region18: #{tpu_custom_call.1} parent=11 // pred_check_branch
          %166 = sbr.rel (%p164) target = $region20
        $region19: #{tpu_custom_call.1} parent=11 // pred_region
          _
        $region20: #{tpu_custom_call.1} parent=11 // pred_fallthru
          _
        // Predicated region
        $region21: #{tpu_custom_call.1} parent=11 // pred_check
          %p167 = pneg %p118
        $region22: #{tpu_custom_call.1} parent=11 // pred_check_branch
          %169 = sbr.rel (%p167) target = $region24
        $region23: #{tpu_custom_call.1} parent=11 // pred_region
          _
        $region24: #{tpu_custom_call.1} parent=11 // pred_fallthru
          _
      $region12: #{tpu_custom_call.1} parent=5 // pred_fallthru
        _
      %p170 = scmp.lt.s32.totalorder %s13, 2
      // Predicated region
      $region25: #{tpu_custom_call.1} parent=5 // pred_check
        %p171 = pneg %p170
      $region26: #{tpu_custom_call.1} parent=5 // pred_check_branch
        %173 = sbr.rel (%p171) target = $region28
      $region27: #{tpu_custom_call.1} parent=5 // pred_region
        // Predicated region
        $region29: #{tpu_custom_call.1} parent=27 // pred_check
          %p174 = pneg %p49
        $region30: #{tpu_custom_call.1} parent=27 // pred_check_branch
          %176 = sbr.rel (%p174) target = $region32
        $region31: #{tpu_custom_call.1} parent=27 // pred_region
          %s177 = ssub.s32 1, %s20
          %s178 = smul.u32 %s177, %s21
          %s179 = smul.u32 2, %s178
          %p180 = scmp.lt.s32.totalorder %s179, 1
          %s181 = scalar_select %p180, %s179, 1
          %s182 = smul.addr %s181, 3
          %s183 = smul.addr %s182, 2
          %s184 = scalar_lea.vmem %s0, %s183
          %s185 = ssub.s32 1, %s20
          %s186 = smul.u32 %s185, %s21
          %s187 = smul.u32 2, %s186
        $region32: #{tpu_custom_call.1} parent=27 // pred_fallthru
          _
      $region28: #{tpu_custom_call.1} parent=5 // pred_fallthru
        _
      %p188 = scmp.le.s32.totalorder 1, %s13
      %p189 = scmp.lt.s32.totalorder %s13, 3
      %p190 = pnand %p188, %p189
      %p191 = pneg %p190
      // Predicated region
      $region33: #{tpu_custom_call.1} parent=5 // pred_check
        _
      $region34: #{tpu_custom_call.1} parent=5 // pred_check_branch
        %193 = sbr.rel (%p190) target = $region36
      $region35: #{tpu_custom_call.1} parent=5 // pred_region
        %s194 = ssub.s32 %s13, 1
        %s195 = ssub.s32 1, %s22
        %s196 = smul.u32 %s195, %s23
        %s197 = smul.u32 2, %s196
        %p198 = scmp.lt.s32.totalorder %s197, 1
        %s199 = scalar_select %p198, %s197, 1
        %s200 = smul.addr %s199, 3
        %s201 = smul.addr %s200, 2
        %s202 = scalar_lea.vmem %s0, %s201
        %p203 = pneg %p55
        %p204 = pneg %p52
        %p205 = pneg %p76
        %p206 = pneg %p73
        %p207 = pneg %p97
        %p208 = pneg %p94
        %p209 = pneg %p118
        %p210 = pneg %p115
        %p211 = pneg %p146
        %p212 = pneg %p143
        %s213 = sand.u32 %s133, 1
        %s214 = scalar_lea.sflag [#allocation6], %s213
        %s215 = sand.u32 %s133, 1
        %s216 = smul.addr %s215, 32
        %s217 = scalar_lea.vmem [#allocation5], %s216
        %s218 = ssub.s32 1, %s22
        %s219 = smul.u32 %s218, %s23
        %s220 = smul.u32 2, %s219
        %p221 = scmp.lt.s32.totalorder %s220, 1
        %s222 = scalar_select %p221, %s220, 1
        %s223 = smul.addr %s222, 3
        %s224 = smul.addr %s223, 2
        %s225 = scalar_lea.vmem %s0, %s224
        %s226 = ssub.s32 1, %s22
        %s227 = smul.u32 %s226, %s23
        %s228 = smul.u32 2, %s227
        %s229 = smul.u32 %s22, %s23
        %s230 = smul.u32 2, %s229
        %p232 = scmp.eq.s32.totalorder %s22, 0
        // Predicated region
        $region37: #{tpu_custom_call.1} parent=35 // pred_check
          %p233 = pneg %p232
        $region38: #{tpu_custom_call.1} parent=35 // pred_check_branch
          %235 = sbr.rel (%p233) target = $region40
        $region39: #{tpu_custom_call.1} parent=35 // pred_region
          %p236 = scmp.eq.s32.totalorder %s23, 0
          // Predicated region
          $region41: #{tpu_custom_call.1} parent=39 // pred_check
            %p237 = pneg %p236
          $region42: #{tpu_custom_call.1} parent=39 // pred_check_branch
            %239 = sbr.rel (%p237) target = $region44
          $region43: #{tpu_custom_call.1} parent=39 // pred_region
            %vm240 = vcmask 7168
            %241 = vst.msk [vmem:[#allocation3] sm:$0xff] %vm240, 0.0
            %242 = vst.msk [vmem:[#allocation4] sm:$0xff] %vm240, 0.0
          $region44: #{tpu_custom_call.1} parent=39 // pred_fallthru
            _
          %v243 = vld [vmem:[%s225] sm:$0x3f]
          %245 = vst [vmem:[#allocation1] ss:$4 sm:$0xff] %v243
          %v246 = vld.sshfl [vmem:[#allocation1] sm:$0xff pattern:$0x73625140]
          %v247 = vld.sshfl [vmem:[#allocation1 + $0x8] sm:$0xff pattern:$0x73625140]
          %v248 = vld.sshfl [vmem:[#allocation1 + $0x10] sm:$0xff pattern:$0x73625140]
          %s249 = scalar_lea.vmem [#allocation1], 1
          %250 = vst [vmem:[%s249] ss:$4 sm:$0xff] %v243
          %v251 = vld.sshfl [vmem:[#allocation1] sm:$0xff pattern:$0x73625140]
          %v253 = vld.sshfl [vmem:[#allocation1 + $0x8] sm:$0xff pattern:$0x73625140]
          %v255 = vld.sshfl [vmem:[#allocation1 + $0x10] sm:$0xff pattern:$0x73625140]
          %257 = vrot.lane.b32.xlu0 %v251, 127
          %v258 = vpop.permute.xlu0 %257
          %259 = vrot.lane.b32.xlu0 %v253, 127
          %v260 = vpop.permute.xlu0 %259
          %261 = vrot.lane.b32.xlu0 %v255, 127
          %v262 = vpop.permute.xlu0 %261
          %vm263 = vcmask 1039360
          %v264 = vsel %vm263, %v258, %v260
          %v265 = vsel %vm263, %v260, %v262
          %s266 = scalar_lea.vmem [#allocation1], 2
          %267 = vst [vmem:[%s266] ss:$4 sm:$0xff] %v243
          %v268 = vld.sshfl [vmem:[#allocation1] sm:$0xff pattern:$0x73625140]
          %v270 = vld.sshfl [vmem:[#allocation1 + $0x8] sm:$0xff pattern:$0x73625140]
          %v272 = vld.sshfl [vmem:[#allocation1 + $0x10] sm:$0xff pattern:$0x73625140]
          %274 = vrot.lane.b32.xlu0 %v268, 126
          %v275 = vpop.permute.xlu0 %274
          %276 = vrot.lane.b32.xlu0 %v270, 126
          %v277 = vpop.permute.xlu0 %276
          %278 = vrot.lane.b32.xlu0 %v272, 126
          %v279 = vpop.permute.xlu0 %278
          %vm280 = vcmask 1031168
          %v281 = vsel %vm280, %v275, %v277
          %v282 = vsel %vm280, %v277, %v279
          %s283 = scalar_lea.vmem [#allocation1], 3
          %284 = vst [vmem:[%s283] ss:$4 sm:$0xff] %v243
          %v285 = vld.sshfl [vmem:[#allocation1] sm:$0xff pattern:$0x73625140]
          %v287 = vld.sshfl [vmem:[#allocation1 + $0x8] sm:$0xff pattern:$0x73625140]
          %v289 = vld.sshfl [vmem:[#allocation1 + $0x10] sm:$0xff pattern:$0x73625140]
          %291 = vrot.lane.b32.xlu0 %v285, 110
          %v292 = vpop.permute.xlu0 %291
          %293 = vrot.lane.b32.xlu0 %v287, 110
          %v294 = vpop.permute.xlu0 %293
          %295 = vrot.lane.b32.xlu0 %v289, 110
          %v296 = vpop.permute.xlu0 %295
          %vm297 = vcmask 900096
          %v298 = vsel %vm297, %v292, %v294
          %v299 = vsel %vm297, %v294, %v296
          %300 = vst [vmem:[#allocation1] ss:$4 sm:$0xff] %v243
          %v301 = vld.sshfl [vmem:[#allocation1] sm:$0xff pattern:$0x73625140]
          %v303 = vld.sshfl [vmem:[#allocation1 + $0x8] sm:$0xff pattern:$0x73625140]
          %v305 = vld.sshfl [vmem:[#allocation1 + $0x10] sm:$0xff pattern:$0x73625140]
          %307 = vrot.lane.b32.xlu0 %v301, 109
          %v308 = vpop.permute.xlu0 %307
          %309 = vrot.lane.b32.xlu0 %v303, 109
          %v310 = vpop.permute.xlu0 %309
          %311 = vrot.lane.b32.xlu0 %v305, 109
          %v312 = vpop.permute.xlu0 %311
          %vm313 = vcmask 891904
          %v314 = vsel %vm313, %v308, %v310
          %v315 = vsel %vm313, %v310, %v312
          %s316 = scalar_lea.vmem [#allocation1], 1
          %317 = vst [vmem:[%s316] ss:$4 sm:$0xff] %v243
          %v318 = vld.sshfl [vmem:[#allocation1] sm:$0xff pattern:$0x73625140]
          %v320 = vld.sshfl [vmem:[#allocation1 + $0x8] sm:$0xff pattern:$0x73625140]
          %v322 = vld.sshfl [vmem:[#allocation1 + $0x10] sm:$0xff pattern:$0x73625140]
          %324 = vrot.lane.b32.xlu0 %v318, 108
          %v325 = vpop.permute.xlu0 %324
          %326 = vrot.lane.b32.xlu0 %v320, 108
          %v327 = vpop.permute.xlu0 %326
          %328 = vrot.lane.b32.xlu0 %v322, 108
          %v329 = vpop.permute.xlu0 %328
          %vm330 = vcmask 883712
          %v331 = vsel %vm330, %v325, %v327
          %v332 = vsel %vm330, %v327, %v329
          %s333 = scalar_lea.vmem [#allocation1], 2
          %334 = vst [vmem:[%s333] ss:$4 sm:$0xff] %v243
          %v335 = vld.sshfl [vmem:[#allocation1] sm:$0xff pattern:$0x73625140]
          %v337 = vld.sshfl [vmem:[#allocation1 + $0x8] sm:$0xff pattern:$0x73625140]
          %v339 = vld.sshfl [vmem:[#allocation1 + $0x10] sm:$0xff pattern:$0x73625140]
          %341 = vrot.lane.b32.xlu0 %v335, 92
          %v342 = vpop.permute.xlu0 %341
          %343 = vrot.lane.b32.xlu0 %v337, 92
          %v344 = vpop.permute.xlu0 %343
          %345 = vrot.lane.b32.xlu0 %v339, 92
          %v346 = vpop.permute.xlu0 %345
          %vm347 = vcmask 752640
          %v348 = vsel %vm347, %v342, %v344
          %v349 = vsel %vm347, %v344, %v346
          %s350 = scalar_lea.vmem [#allocation1], 3
          %351 = vst [vmem:[%s350] ss:$4 sm:$0xff] %v243
          %v352 = vld.sshfl [vmem:[#allocation1] sm:$0xff pattern:$0x73625140]
          %v354 = vld.sshfl [vmem:[#allocation1 + $0x8] sm:$0xff pattern:$0x73625140]
          %v356 = vld.sshfl [vmem:[#allocation1 + $0x10] sm:$0xff pattern:$0x73625140]
          %358 = vrot.lane.b32.xlu0 %v352, 91
          %v359 = vpop.permute.xlu0 %358
          %360 = vrot.lane.b32.xlu0 %v354, 91
          %v361 = vpop.permute.xlu0 %360
          %362 = vrot.lane.b32.xlu0 %v356, 91
          %v363 = vpop.permute.xlu0 %362
          %vm364 = vcmask 744448
          %v365 = vsel %vm364, %v359, %v361
          %v366 = vsel %vm364, %v361, %v363
          %367 = vst [vmem:[#allocation1] ss:$4 sm:$0xff] %v243
          %v368 = vld.sshfl [vmem:[#allocation1] sm:$0xff pattern:$0x73625140]
          %v370 = vld.sshfl [vmem:[#allocation1 + $0x8] sm:$0xff pattern:$0x73625140]
          %v372 = vld.sshfl [vmem:[#allocation1 + $0x10] sm:$0xff pattern:$0x73625140]
          %374 = vrot.lane.b32.xlu0 %v368, 90
          %v375 = vpop.permute.xlu0 %374
          %376 = vrot.lane.b32.xlu0 %v370, 90
          %v377 = vpop.permute.xlu0 %376
          %378 = vrot.lane.b32.xlu0 %v372, 90
          %v379 = vpop.permute.xlu0 %378
          %vm380 = vcmask 736256
          %v381 = vsel %vm380, %v375, %v377
          %v382 = vsel %vm380, %v377, %v379
          %vm383 = vcmask 1041408
          %v385 = vsel %vm383, %v246, %v264
          %v387 = vsel %vm383, %v247, %v265
          %v389 = vsel %vm383, %v248, %v262
          %vm390 = vcmask 1043456
          %v392 = vsel %vm390, %v385, %v281
          %v394 = vsel %vm390, %v387, %v282
          %v396 = vsel %vm390, %v389, %v279
          %vm397 = vcmask 1045504
          %v399 = vsel %vm397, %v392, %v298
          %v402 = vsel %vm397, %v394, %v299
          %v405 = vsel %vm397, %v396, %v296
          %v409 = vsel %vm383, %v314, %v331
          %v412 = vsel %vm383, %v315, %v332
          %v415 = vsel %vm383, %v312, %v329
          %v417 = vsel %vm390, %v409, %v348
          %v419 = vsel %vm390, %v412, %v349
          %v421 = vsel %vm390, %v415, %v346
          %v423 = vsel %vm397, %v417, %v365
          %v426 = vsel %vm397, %v419, %v366
          %v429 = vsel %vm397, %v421, %v363
          %v431 = vld [vmem:[%s1] sm:$0xf]
          %vm432 = vcmask 293888
          %v434 = vsel %vm432, %v431, 0
          %v437 = vsel %vm383, %v381, 0
          %v440 = vsel %vm383, %v382, 0
          %v443 = vsel %vm383, %v379, 0
          %445 = vmatpush.bf16.msra.mxu0 0
          %446 = vmatpush.bf16.msra.mxu0 0
          %447 = vmatpush.bf16.msra.mxu0 0
          %448 = vmatpush.bf16.msra.mxu0 0
          %449 = vmatpush.bf16.msra.mxu0 0
          %450 = vmatpush.bf16.msra.mxu0 %v437
          %451 = vmatpush.bf16.msra.mxu0 %v423
          %452 = vmatpush.bf16.msra.mxu0 %v399
          %453 = vmatmul.bf16.gmra.mxu0 %v434
          %v454 = vpop.f32.mrf.mxu0
          %v455 = vadd.f32 0.0, %v454
          %v456 = vpop.f32.mrf.mxu0
          %457 = vdwg.mxu0
          %458 = vmatpush.bf16.msra.mxu0 0
          %459 = vmatpush.bf16.msra.mxu0 0
          %460 = vmatpush.bf16.msra.mxu0 0
          %461 = vmatpush.bf16.msra.mxu0 0
          %462 = vmatpush.bf16.msra.mxu0 0
          %463 = vmatpush.bf16.msra.mxu0 %v440
          %464 = vmatpush.bf16.msra.mxu0 %v426
          %465 = vmatpush.bf16.msra.mxu0 %v402
          %466 = vmatmul.bf16.gmra.mxu0 %v434
          %v467 = vpop.f32.mrf.mxu0
          %v468 = vadd.f32 0.0, %v467
          %v469 = vpop.f32.mrf.mxu0
          %470 = vdwg.mxu0
          %471 = vmatpush.bf16.msra.mxu0 0
          %472 = vmatpush.bf16.msra.mxu0 0
          %473 = vmatpush.bf16.msra.mxu0 0
          %474 = vmatpush.bf16.msra.mxu0 0
          %475 = vmatpush.bf16.msra.mxu0 0
          %476 = vmatpush.bf16.msra.mxu0 %v443
          %477 = vmatpush.bf16.msra.mxu0 %v429
          %478 = vmatpush.bf16.msra.mxu0 %v405
          %479 = vmatmul.bf16.gmra.mxu0 %v434
          %v480 = vpop.f32.mrf.mxu0
          %v481 = vadd.f32 0.0, %v480
          %v482 = vpop.f32.mrf.mxu0
          %483 = vdwg.mxu0
          %485 = vrot.lane.b32.xlu0 %v455, 126
          %v486 = vpop.permute.xlu0 %485
          %488 = vrot.lane.b32.xlu0 %v455, 124
          %v489 = vpop.permute.xlu0 %488
          %491 = vrot.lane.b32.xlu0 %v455, 122
          %v492 = vpop.permute.xlu0 %491
          %494 = vrot.lane.b32.xlu0 %v455, 120
          %v495 = vpop.permute.xlu0 %494
          %497 = vrot.lane.b32.xlu0 %v455, 118
          %v498 = vpop.permute.xlu0 %497
          %500 = vrot.lane.b32.xlu0 %v455, 116
          %v501 = vpop.permute.xlu0 %500
          %504 = vrot.lane.b32.xlu0 %v455, 114
          %v505 = vpop.permute.xlu0 %504
          %506 = vrot.lane.b32.xlu0 %v468, 114
          %v507 = vpop.permute.xlu0 %506
          %vm508 = vcmask 932864
          %v509 = vsel %vm508, %v505, %v507
          %511 = vrot.lane.b32.xlu0 %v468, 112
          %v512 = vpop.permute.xlu0 %511
          %514 = vrot.lane.b32.xlu0 %v468, 110
          %v515 = vpop.permute.xlu0 %514
          %517 = vrot.lane.b32.xlu0 %v468, 108
          %v518 = vpop.permute.xlu0 %517
          %520 = vrot.lane.b32.xlu0 %v468, 106
          %v521 = vpop.permute.xlu0 %520
          %523 = vrot.lane.b32.xlu0 %v468, 104
          %v524 = vpop.permute.xlu0 %523
          %526 = vrot.lane.b32.xlu0 %v468, 102
          %v527 = vpop.permute.xlu0 %526
          %530 = vrot.lane.b32.xlu0 %v468, 100
          %v531 = vpop.permute.xlu0 %530
          %532 = vrot.lane.b32.xlu0 %v481, 100
          %v533 = vpop.permute.xlu0 %532
          %vm534 = vcmask 818176
          %v535 = vsel %vm534, %v531, %v533
          %537 = vrot.lane.b32.xlu0 %v481, 98
          %v538 = vpop.permute.xlu0 %537
          %vm540 = vcmask 130048
          %v541 = vsel %vm540, %v455, %v486
          %vm542 = vcmask 261120
          %v543 = vsel %vm542, %v541, %v489
          %vm544 = vcmask 392192
          %v545 = vsel %vm544, %v543, %v492
          %vm546 = vcmask 523264
          %v547 = vsel %vm546, %v545, %v495
          %vm548 = vcmask 654336
          %v549 = vsel %vm548, %v547, %v498
          %vm550 = vcmask 785408
          %v551 = vsel %vm550, %v549, %v501
          %vm552 = vcmask 916480
          %v553 = vsel %vm552, %v551, %v509
          %v554 = vsel %vm540, %v512, %v515
          %v555 = vsel %vm542, %v554, %v518
          %v556 = vsel %vm544, %v555, %v521
          %v557 = vsel %vm546, %v556, %v524
          %v558 = vsel %vm548, %v557, %v527
          %v559 = vsel %vm550, %v558, %v535
          %v560 = vsel %vm552, %v559, %v538
          %s561 = smul.u32 %s23, 2
          %s562 = smul.u32 %s561, 2
          %s563 = smul.addr %s562, 8
          %s564 = scalar_lea.vmem [#allocation2], %s563
          %565 = vst [vmem:[%s564] sm:$0xff] %v553
          %566 = vst [vmem:[%s564 + $0x8] sm:$0xff] %v560
          %v567 = vadd.f32 %v553, %v560
          %568 = vadd.xlane.f32.xlu0 %v567
          %v569 = vpop.xlane.xlu0 %568
          %v570 = vadd.f32 %v569, 0.0
          %v571 = vmul.f32 %v553, %v553
          %v572 = vmul.f32 %v560, %v560
          %v573 = vadd.f32 %v571, %v572
          %574 = vadd.xlane.f32.xlu0 %v573
          %v575 = vpop.xlane.xlu0 %574
          %v576 = vadd.f32 %v575, 0.0
          %s577 = scalar_lea.vmem %s225, 6
          %v578 = vld [vmem:[%s577] sm:$0x3f]
          %580 = vst [vmem:[#allocation1] ss:$4 sm:$0xff] %v578
          %v581 = vld.sshfl [vmem:[#allocation1] sm:$0xff pattern:$0x73625140]
          %v582 = vld.sshfl [vmem:[#allocation1 + $0x8] sm:$0xff pattern:$0x73625140]
          %v583 = vld.sshfl [vmem:[#allocation1 + $0x10] sm:$0xff pattern:$0x73625140]
          %s584 = scalar_lea.vmem [#allocation1], 1
          %585 = vst [vmem:[%s584] ss:$4 sm:$0xff] %v578
          %v586 = vld.sshfl [vmem:[#allocation1] sm:$0xff pattern:$0x73625140]
          %v588 = vld.sshfl [vmem:[#allocation1 + $0x8] sm:$0xff pattern:$0x73625140]
          %v590 = vld.sshfl [vmem:[#allocation1 + $0x10] sm:$0xff pattern:$0x73625140]
          %592 = vrot.lane.b32.xlu0 %v586, 127
          %v593 = vpop.permute.xlu0 %592
          %594 = vrot.lane.b32.xlu0 %v588, 127
          %v595 = vpop.permute.xlu0 %594
          %596 = vrot.lane.b32.xlu0 %v590, 127
          %v597 = vpop.permute.xlu0 %596
          %v598 = vsel %vm263, %v593, %v595
          %v599 = vsel %vm263, %v595, %v597
          %s600 = scalar_lea.vmem [#allocation1], 2
          %601 = vst [vmem:[%s600] ss:$4 sm:$0xff] %v578
          %v602 = vld.sshfl [vmem:[#allocation1] sm:$0xff pattern:$0x73625140]
          %v604 = vld.sshfl [vmem:[#allocation1 + $0x8] sm:$0xff pattern:$0x73625140]
          %v606 = vld.sshfl [vmem:[#allocation1 + $0x10] sm:$0xff pattern:$0x73625140]
          %608 = vrot.lane.b32.xlu0 %v602, 126
          %v609 = vpop.permute.xlu0 %608
          %610 = vrot.lane.b32.xlu0 %v604, 126
          %v611 = vpop.permute.xlu0 %610
          %612 = vrot.lane.b32.xlu0 %v606, 126
          %v613 = vpop.permute.xlu0 %612
          %v614 = vsel %vm280, %v609, %v611
          %v615 = vsel %vm280, %v611, %v613
          %s616 = scalar_lea.vmem [#allocation1], 3
          %617 = vst [vmem:[%s616] ss:$4 sm:$0xff] %v578
          %v618 = vld.sshfl [vmem:[#allocation1] sm:$0xff pattern:$0x73625140]
          %v620 = vld.sshfl [vmem:[#allocation1 + $0x8] sm:$0xff pattern:$0x73625140]
          %v622 = vld.sshfl [vmem:[#allocation1 + $0x10] sm:$0xff pattern:$0x73625140]
          %624 = vrot.lane.b32.xlu0 %v618, 110
          %v625 = vpop.permute.xlu0 %624
          %626 = vrot.lane.b32.xlu0 %v620, 110
          %v627 = vpop.permute.xlu0 %626
          %628 = vrot.lane.b32.xlu0 %v622, 110
          %v629 = vpop.permute.xlu0 %628
          %v630 = vsel %vm297, %v625, %v627
          %v631 = vsel %vm297, %v627, %v629
          %632 = vst [vmem:[#allocation1] ss:$4 sm:$0xff] %v578
          %v633 = vld.sshfl [vmem:[#allocation1] sm:$0xff pattern:$0x73625140]
          %v635 = vld.sshfl [vmem:[#allocation1 + $0x8] sm:$0xff pattern:$0x73625140]
          %v637 = vld.sshfl [vmem:[#allocation1 + $0x10] sm:$0xff pattern:$0x73625140]
          %639 = vrot.lane.b32.xlu0 %v633, 109
          %v640 = vpop.permute.xlu0 %639
          %641 = vrot.lane.b32.xlu0 %v635, 109
          %v642 = vpop.permute.xlu0 %641
          %643 = vrot.lane.b32.xlu0 %v637, 109
          %v644 = vpop.permute.xlu0 %643
          %v645 = vsel %vm313, %v640, %v642
          %v646 = vsel %vm313, %v642, %v644
          %s647 = scalar_lea.vmem [#allocation1], 1
          %648 = vst [vmem:[%s647] ss:$4 sm:$0xff] %v578
          %v649 = vld.sshfl [vmem:[#allocation1] sm:$0xff pattern:$0x73625140]
          %v651 = vld.sshfl [vmem:[#allocation1 + $0x8] sm:$0xff pattern:$0x73625140]
          %v653 = vld.sshfl [vmem:[#allocation1 + $0x10] sm:$0xff pattern:$0x73625140]
          %655 = vrot.lane.b32.xlu0 %v649, 108
          %v656 = vpop.permute.xlu0 %655
          %657 = vrot.lane.b32.xlu0 %v651, 108
          %v658 = vpop.permute.xlu0 %657
          %659 = vrot.lane.b32.xlu0 %v653, 108
          %v660 = vpop.permute.xlu0 %659
          %v661 = vsel %vm330, %v656, %v658
          %v662 = vsel %vm330, %v658, %v660
          %s663 = scalar_lea.vmem [#allocation1], 2
          %664 = vst [vmem:[%s663] ss:$4 sm:$0xff] %v578
          %v665 = vld.sshfl [vmem:[#allocation1] sm:$0xff pattern:$0x73625140]
          %v667 = vld.sshfl [vmem:[#allocation1 + $0x8] sm:$0xff pattern:$0x73625140]
          %v669 = vld.sshfl [vmem:[#allocation1 + $0x10] sm:$0xff pattern:$0x73625140]
          %671 = vrot.lane.b32.xlu0 %v665, 92
          %v672 = vpop.permute.xlu0 %671
          %673 = vrot.lane.b32.xlu0 %v667, 92
          %v674 = vpop.permute.xlu0 %673
          %675 = vrot.lane.b32.xlu0 %v669, 92
          %v676 = vpop.permute.xlu0 %675
          %v677 = vsel %vm347, %v672, %v674
          %v678 = vsel %vm347, %v674, %v676
          %s679 = scalar_lea.vmem [#allocation1], 3
          %680 = vst [vmem:[%s679] ss:$4 sm:$0xff] %v578
          %v681 = vld.sshfl [vmem:[#allocation1] sm:$0xff pattern:$0x73625140]
          %v683 = vld.sshfl [vmem:[#allocation1 + $0x8] sm:$0xff pattern:$0x73625140]
          %v685 = vld.sshfl [vmem:[#allocation1 + $0x10] sm:$0xff pattern:$0x73625140]
          %687 = vrot.lane.b32.xlu0 %v681, 91
          %v688 = vpop.permute.xlu0 %687
          %689 = vrot.lane.b32.xlu0 %v683, 91
          %v690 = vpop.permute.xlu0 %689
          %691 = vrot.lane.b32.xlu0 %v685, 91
          %v692 = vpop.permute.xlu0 %691
          %v693 = vsel %vm364, %v688, %v690
          %v694 = vsel %vm364, %v690, %v692
          %695 = vst [vmem:[#allocation1] ss:$4 sm:$0xff] %v578
          %v696 = vld.sshfl [vmem:[#allocation1] sm:$0xff pattern:$0x73625140]
          %v698 = vld.sshfl [vmem:[#allocation1 + $0x8] sm:$0xff pattern:$0x73625140]
          %v700 = vld.sshfl [vmem:[#allocation1 + $0x10] sm:$0xff pattern:$0x73625140]
          %702 = vrot.lane.b32.xlu0 %v696, 90
          %v703 = vpop.permute.xlu0 %702
          %704 = vrot.lane.b32.xlu0 %v698, 90
          %v705 = vpop.permute.xlu0 %704
          %706 = vrot.lane.b32.xlu0 %v700, 90
          %v707 = vpop.permute.xlu0 %706
          %v708 = vsel %vm380, %v703, %v705
          %v709 = vsel %vm380, %v705, %v707
          %v711 = vsel %vm383, %v581, %v598
          %v713 = vsel %vm383, %v582, %v599
          %v715 = vsel %vm383, %v583, %v597
          %v717 = vsel %vm390, %v711, %v614
          %v719 = vsel %vm390, %v713, %v615
          %v721 = vsel %vm390, %v715, %v613
          %v723 = vsel %vm397, %v717, %v630
          %v726 = vsel %vm397, %v719, %v631
          %v729 = vsel %vm397, %v721, %v629
          %v733 = vsel %vm383, %v645, %v661
          %v736 = vsel %vm383, %v646, %v662
          %v739 = vsel %vm383, %v644, %v660
          %v741 = vsel %vm390, %v733, %v677
          %v743 = vsel %vm390, %v736, %v678
          %v745 = vsel %vm390, %v739, %v676
          %v747 = vsel %vm397, %v741, %v693
          %v750 = vsel %vm397, %v743, %v694
          %v753 = vsel %vm397, %v745, %v692
          %v755 = vld [vmem:[%s1] sm:$0xf]
          %v757 = vsel %vm432, %v755, 0
          %v760 = vsel %vm383, %v708, 0
          %v763 = vsel %vm383, %v709, 0
          %v766 = vsel %vm383, %v707, 0
          %768 = vmatpush.bf16.msra.mxu0 0
          %769 = vmatpush.bf16.msra.mxu0 0
          %770 = vmatpush.bf16.msra.mxu0 0
          %771 = vmatpush.bf16.msra.mxu0 0
          %772 = vmatpush.bf16.msra.mxu0 0
          %773 = vmatpush.bf16.msra.mxu0 %v760
          %774 = vmatpush.bf16.msra.mxu0 %v747
          %775 = vmatpush.bf16.msra.mxu0 %v723
          %776 = vmatmul.bf16.gmra.mxu0 %v757
          %v777 = vpop.f32.mrf.mxu0
          %v778 = vadd.f32 0.0, %v777
          %v779 = vpop.f32.mrf.mxu0
          %780 = vdwg.mxu0
          %781 = vmatpush.bf16.msra.mxu0 0
          %782 = vmatpush.bf16.msra.mxu0 0
          %783 = vmatpush.bf16.msra.mxu0 0
          %784 = vmatpush.bf16.msra.mxu0 0
          %785 = vmatpush.bf16.msra.mxu0 0
          %786 = vmatpush.bf16.msra.mxu0 %v763
          %787 = vmatpush.bf16.msra.mxu0 %v750
          %788 = vmatpush.bf16.msra.mxu0 %v726
          %789 = vmatmul.bf16.gmra.mxu0 %v757
          %v790 = vpop.f32.mrf.mxu0
          %v791 = vadd.f32 0.0, %v790
          %v792 = vpop.f32.mrf.mxu0
          %793 = vdwg.mxu0
          %794 = vmatpush.bf16.msra.mxu0 0
          %795 = vmatpush.bf16.msra.mxu0 0
          %796 = vmatpush.bf16.msra.mxu0 0
          %797 = vmatpush.bf16.msra.mxu0 0
          %798 = vmatpush.bf16.msra.mxu0 0
          %799 = vmatpush.bf16.msra.mxu0 %v766
          %800 = vmatpush.bf16.msra.mxu0 %v753
          %801 = vmatpush.bf16.msra.mxu0 %v729
          %802 = vmatmul.bf16.gmra.mxu0 %v757
          %v803 = vpop.f32.mrf.mxu0
          %v804 = vadd.f32 0.0, %v803
          %v805 = vpop.f32.mrf.mxu0
          %806 = vdwg.mxu0
          %808 = vrot.lane.b32.xlu0 %v778, 126
          %v809 = vpop.permute.xlu0 %808
          %811 = vrot.lane.b32.xlu0 %v778, 124
          %v812 = vpop.permute.xlu0 %811
          %814 = vrot.lane.b32.xlu0 %v778, 122
          %v815 = vpop.permute.xlu0 %814
          %817 = vrot.lane.b32.xlu0 %v778, 120
          %v818 = vpop.permute.xlu0 %817
          %820 = vrot.lane.b32.xlu0 %v778, 118
          %v821 = vpop.permute.xlu0 %820
          %823 = vrot.lane.b32.xlu0 %v778, 116
          %v824 = vpop.permute.xlu0 %823
          %827 = vrot.lane.b32.xlu0 %v778, 114
          %v828 = vpop.permute.xlu0 %827
          %829 = vrot.lane.b32.xlu0 %v791, 114
          %v830 = vpop.permute.xlu0 %829
          %v831 = vsel %vm508, %v828, %v830
          %833 = vrot.lane.b32.xlu0 %v791, 112
          %v834 = vpop.permute.xlu0 %833
          %836 = vrot.lane.b32.xlu0 %v791, 110
          %v837 = vpop.permute.xlu0 %836
          %839 = vrot.lane.b32.xlu0 %v791, 108
          %v840 = vpop.permute.xlu0 %839
          %842 = vrot.lane.b32.xlu0 %v791, 106
          %v843 = vpop.permute.xlu0 %842
          %845 = vrot.lane.b32.xlu0 %v791, 104
          %v846 = vpop.permute.xlu0 %845
          %848 = vrot.lane.b32.xlu0 %v791, 102
          %v849 = vpop.permute.xlu0 %848
          %852 = vrot.lane.b32.xlu0 %v791, 100
          %v853 = vpop.permute.xlu0 %852
          %854 = vrot.lane.b32.xlu0 %v804, 100
          %v855 = vpop.permute.xlu0 %854
          %v856 = vsel %vm534, %v853, %v855
          %858 = vrot.lane.b32.xlu0 %v804, 98
          %v859 = vpop.permute.xlu0 %858
          %v861 = vsel %vm540, %v778, %v809
          %v862 = vsel %vm542, %v861, %v812
          %v863 = vsel %vm544, %v862, %v815
          %v864 = vsel %vm546, %v863, %v818
          %v865 = vsel %vm548, %v864, %v821
          %v866 = vsel %vm550, %v865, %v824
          %v867 = vsel %vm552, %v866, %v831
          %v868 = vsel %vm540, %v834, %v837
          %v869 = vsel %vm542, %v868, %v840
          %v870 = vsel %vm544, %v869, %v843
          %v871 = vsel %vm546, %v870, %v846
          %v872 = vsel %vm548, %v871, %v849
          %v873 = vsel %vm550, %v872, %v856
          %v874 = vsel %vm552, %v873, %v859
          %s875 = sadd.s32 %s561, 1
          %s876 = smul.u32 %s875, 2
          %s877 = smul.addr %s876, 8
          %s878 = scalar_lea.vmem [#allocation2], %s877
          %879 = vst [vmem:[%s878] sm:$0xff] %v867
          %880 = vst [vmem:[%s878 + $0x8] sm:$0xff] %v874
          %v881 = vadd.f32 %v867, %v874
          %882 = vadd.xlane.f32.xlu0 %v881
          %v883 = vpop.xlane.xlu0 %882
          %v884 = vadd.f32 %v570, %v883
          %v885 = vmul.f32 %v867, %v867
          %v886 = vmul.f32 %v874, %v874
          %v887 = vadd.f32 %v885, %v886
          %888 = vadd.xlane.f32.xlu0 %v887
          %v889 = vpop.xlane.xlu0 %888
          %v890 = vadd.f32 %v576, %v889
          %v891 = vld [vmem:[#allocation3] sm:$0xff]
          %v892 = vadd.f32 %v891, %v884
          %vm893 = vcmask 7168
          %894 = vst.msk [vmem:[#allocation3] sm:$0xff] %vm893, %v892
          %v895 = vld [vmem:[#allocation4] sm:$0xff]
          %v896 = vadd.f32 %v895, %v890
          %897 = vst.msk [vmem:[#allocation4] sm:$0xff] %vm893, %v896
        $region40: #{tpu_custom_call.1} parent=35 // pred_fallthru
          _
        %p898 = scmp.eq.s32.totalorder %s22, 1
        // Predicated region
        $region45: #{tpu_custom_call.1} parent=35 // pred_check
          %p899 = pneg %p898
        $region46: #{tpu_custom_call.1} parent=35 // pred_check_branch
          %901 = sbr.rel (%p899) target = $region48
        $region47: #{tpu_custom_call.1} parent=35 // pred_region
          %v902 = vld [vmem:[#allocation3] sm:$0xff]
          %v903 = vmul.f32 %v902, 0.001953125
          %v904 = vld [vmem:[#allocation4] sm:$0xff]
          %v905 = vmul.f32 %v904, 0.001953125
          %v906 = vmul.f32 %v903, %v903
          %v907 = vsub.f32 %v905, %v906
          %v908 = vmax.f32 %v907, 0.0
          %v909 = vld [vmem:[%s2] sm:$0xff]
          %v910 = vadd.f32 %v908, 1e-05
          %v911 = vrsqrt.pop %v910
          %v912 = vmul.f32 %v911, %v910
          %v913 = vmul.f32 %v912, %v911
          %v914 = vmul.f32 0.5, %v913
          %v915 = vsub.f32 1.5, %v914
          %v916 = vmul.f32 %v911, %v915
          %vm917 = vweird.f32 %v910
          %vm918 = vweird.f32 %v911
          %vm919 = vmor %vm917, %vm918
          %v920 = vsel %vm919, %v911, %v916
          %v921 = vmul.f32 %v909, %v920
          %v922 = vld [vmem:[%s3] sm:$0xff]
          %v923 = vmul.f32 %v903, %v921
          %v924 = vsub.f32 %v922, %v923
          %s925 = smul.u32 %s23, 2
          %s926 = smul.u32 %s925, 2
          %s927 = smul.addr %s926, 8
          %s928 = scalar_lea.vmem [#allocation2], %s927
          %v929 = vld [vmem:[%s928] sm:$0xff]
          %v930 = vld [vmem:[%s928 + $0x8] sm:$0xff]
          %932 = vset.pattern.permute.xlu0 0
          %933 = vperm.xlu0 %932, %v921
          %v934 = vpop.permute.xlu0 %933
          %v936 = vmul.f32 %v929, %v934
          %v937 = vmul.f32 %v930, %v934
          %939 = vset.pattern.permute.xlu0 0
          %940 = vperm.xlu0 %939, %v924
          %v941 = vpop.permute.xlu0 %940
          %v943 = vadd.f32 %v936, %v941
          %v944 = vadd.f32 %v937, %v941
          %vm945 = vcmp.gt.f32.partialorder %v943, 0.0
          %vm946 = vcmp.gt.f32.partialorder %v944, 0.0
          %v947 = vmul.f32 %v943, 0.1
          %v948 = vmul.f32 %v944, 0.1
          %v949 = vsel %vm945, %v943, %v947
          %v950 = vsel %vm946, %v944, %v948
          %951 = vst [vmem:[%s217] sm:$0xff] %v949
          %952 = vst [vmem:[%s217 + $0x8] sm:$0xff] %v950
          %s953 = sadd.s32 %s925, 1
          %s954 = smul.u32 %s953, 2
          %s955 = smul.addr %s954, 8
          %s956 = scalar_lea.vmem [#allocation2], %s955
          %v957 = vld [vmem:[%s956] sm:$0xff]
          %v958 = vld [vmem:[%s956 + $0x8] sm:$0xff]
          %v959 = vmul.f32 %v957, %v934
          %v960 = vmul.f32 %v958, %v934
          %v961 = vadd.f32 %v959, %v941
          %v962 = vadd.f32 %v960, %v941
          %vm963 = vcmp.gt.f32.partialorder %v961, 0.0
          %vm964 = vcmp.gt.f32.partialorder %v962, 0.0
          %v965 = vmul.f32 %v961, 0.1
          %v966 = vmul.f32 %v962, 0.1
          %v967 = vsel %vm963, %v961, %v965
          %v968 = vsel %vm964, %v962, %v966
          %s969 = scalar_lea.vmem %s217, 16 [#allocation5]
          %970 = vst [vmem:[%s969] sm:$0xff] %v967
          %971 = vst [vmem:[%s969 + $0x8] sm:$0xff] %v968
        $region48: #{tpu_custom_call.1} parent=35 // pred_fallthru
          _
        %s972 = sand.u32 %s133, 1
        %s973 = scalar_lea.sflag [#allocation6], %s972
        %s974 = sand.u32 %s133, 1
        %s975 = smul.addr %s974, 32
        %s976 = scalar_lea.vmem [#allocation5], %s975
        // Predicated region
        $region49: #{tpu_custom_call.1} parent=35 // pred_check
          %p977 = pneg %p143
        $region50: #{tpu_custom_call.1} parent=35 // pred_check_branch
          %979 = sbr.rel (%p977) target = $region52
        $region51: #{tpu_custom_call.1} parent=35 // pred_region
          %s980 = smul.u32 %s22, %s23
          %s981 = smul.u32 2, %s980
          %983 = vsyncadd %s973, 0
          %s984 = smul.addr %s981, 2
          %s985 = smul.addr %s984, 8
          %s986 = scalar_lea.hbm %s4, %s985
          %s987 = sshll.u32 %s976, 4
          %s988 = int_to_ptr.vmem [resolvable:$true] %s987
          %s989 = sshll.u32 %s986, 4
          %s990 = int_to_ptr.hbm [resolvable:$true] %s989
          %995 = dma.vmem_to_hbm [thread:$0]  %s988, 512, %s990, %s973, 256, 256, 16
        $region52: #{tpu_custom_call.1} parent=35 // pred_fallthru
          _
      $region36: #{tpu_custom_call.1} parent=5 // pred_fallthru
        _
      %p996 = scmp.le.s32.totalorder 2, %s13
      // Predicated region
      $region53: #{tpu_custom_call.1} parent=5 // pred_check
        %p997 = pneg %p996
      $region54: #{tpu_custom_call.1} parent=5 // pred_check_branch
        %999 = sbr.rel (%p997) target = $region56
      $region55: #{tpu_custom_call.1} parent=5 // pred_region
        %s1000 = ssub.s32 %s13, 2
        // Predicated region
        $region57: #{tpu_custom_call.1} parent=55 // pred_check
          %p1001 = pneg %p149
        $region58: #{tpu_custom_call.1} parent=55 // pred_check_branch
          %1003 = sbr.rel (%p1001) target = $region60
        $region59: #{tpu_custom_call.1} parent=55 // pred_region
          %s1004 = sand.u32 %s134, 1
          %s1005 = scalar_lea.sflag [#allocation6], %s1004
          %s1006 = sand.u32 %s134, 1
          %s1007 = smul.addr %s1006, 32
          %s1008 = scalar_lea.vmem [#allocation5], %s1007
          %1010 = dma.done %s1005, 512
        $region60: #{tpu_custom_call.1} parent=55 // pred_fallthru
          _
      $region56: #{tpu_custom_call.1} parent=5 // pred_fallthru
        _
    $region6: #{tpu_custom_call.1} parent=1 // loop_footer
      %s17 = sadd.s32 1, %s13
    $region7: #{tpu_custom_call.1} parent=1 // loop_footer_branch
      %12 = sbr.rel target = $region3
    $region8: #{tpu_custom_call.1} parent=1 // loop_exit
      _
    %1011 = vsyncpa [#allocation6], 1
    %s1012 = scalar_lea.sflag [#allocation6], 1
    %1013 = vsyncpa %s1012, 1

</llo_original>
